<compile_context>
chip_gen: v7x
topology: tpu7x:2x2x1
jax: 0.10.0
libtpu: 0.0.40
codegen_flags: <defaults>
</compile_context>

<pallas_src>
import math
from functools import partial

import jax
import jax.numpy as jnp
from jax.experimental import pallas as pl
from jax.experimental.pallas import tpu as pltpu


def _round_up(a: int, m: int) -> int:
    return ((a + m - 1) // m) * m


# ---------------------------------------------------------------------------
# Pallas kernel: one row-tile of the flattened input.
# ---------------------------------------------------------------------------
def cls_prediction_kernel(
    x_ref,      # (tm, Din)  original dtype (cast to MXU dtype in-register)
    w1_ref,     # (Din, Dp)  mxu_dtype (bf16), columns >= D zero-padded
    b1_ref,     # (1, Dp)    f32, zero-padded
    gw2_ref,    # (1, Dp)    f32, gamma * w2, zero-padded
    sgw2_ref,   # (1, 1)     f32, sum(gamma * w2)
    c_ref,      # (1, 1)     f32, sum(beta * w2) + b2
    o_ref,      # (1, tm)    lane-dense per-row outputs
    *,
    eps: float,
    hidden_true: int,
    mxu_dtype,
):
    # ---- Linear(input_size, hidden): bf16 MXU matmul, f32 accumulation ----
    xb = x_ref[...].astype(mxu_dtype)                     # cast in-register
    h = jnp.dot(xb, w1_ref[...], preferred_element_type=jnp.float32)

    # ---- bias + ReLU (padded columns stay exactly 0) ----
    h = jnp.maximum(h + b1_ref[0], 0.0)                   # (tm, Dp) f32

    # ---- single-pass LayerNorm statistics (divide by the TRUE hidden dim) --
    inv_d = 1.0 / hidden_true
    sum_h = jnp.sum(h, axis=-1, keepdims=True)            # (tm, 1)
    sum_hh = jnp.sum(h * h, axis=-1, keepdims=True)       # (tm, 1)
    # fused LN-affine + Linear(hidden, 1) reduction
    sum_hg = jnp.sum(h * gw2_ref[0], axis=-1, keepdims=True)  # (tm, 1)

    mu = sum_h * inv_d
    var = jnp.maximum(sum_hh * inv_d - mu * mu, 0.0)      # guard tiny negatives
    inv = jax.lax.rsqrt(var + eps)

    out_col = inv * (sum_hg - mu * sgw2_ref[...]) + c_ref[...]   # (tm, 1)

    # ---- lane-dense store: per-row scalars along lanes of a (1, tm) block --
    o_ref[...] = out_col[:, 0][None, :].astype(o_ref.dtype)


# ---------------------------------------------------------------------------
# Wrapper: flatten leading dims, tile rows (ragged grid), call the kernel.
# ---------------------------------------------------------------------------
def cls_prediction_pallas(x, params, *, eps: float = 1e-12,
                          block_rows: int = 512,
                          mxu_dtype=jnp.bfloat16):
    *lead, Din = x.shape
    M = math.prod(lead) if lead else 1
    D = params["w1"].shape[1]
    Dp = _round_up(D, 128)                 # lane-align the hidden dimension

    # No pad / no dtype cast on the big activation tensor.
    x2 = x.reshape(M, Din)

    # Row-tile policy: large tiles for HBM roofline, >=2 grid steps when
    # possible so v7x megacore can shard the "parallel" axis; the ragged last
    # block is handled by Pallas.
    if M <= 256:
        tm = M
    else:
        tm = min(block_rows, _round_up(pl.cdiv(M, 2), 256))
    num_tiles = pl.cdiv(M, tm)
    grid = (num_tiles,)

    # ---- parameter prep (weights only: tiny, one-time) ----
    f32 = jnp.float32
    w1 = params["w1"].astype(mxu_dtype)                          # (Din, D)
    b1 = params["b1"].astype(f32)                                # (1, D)
    gw2 = (params["ln_g"] * params["w2"]).astype(f32)            # (1, D)
    sgw2 = jnp.sum(gw2, axis=-1, keepdims=True).astype(f32)      # (1, 1)
    c = (jnp.sum(params["ln_b"] * params["w2"], axis=-1, keepdims=True)
         + params["b2"]).astype(f32)                             # (1, 1)

    if Dp != D:
        colpad = ((0, 0), (0, Dp - D))
        w1 = jnp.pad(w1, colpad)        # zero columns -> padded h columns == 0
        b1 = jnp.pad(b1, colpad)
        gw2 = jnp.pad(gw2, colpad)

    # ---- VMEM budget from the actual footprint (headroom under v7x 64 MiB) --
    xsize = jnp.dtype(x.dtype).itemsize
    wsize = jnp.dtype(mxu_dtype).itemsize
    footprint = (
        2 * tm * Din * xsize          # x row tile (double-buffered)
        + 2 * Din * Dp * wsize        # W1 (grid-invariant; counted x2 to be safe)
        + 2 * 2 * Dp * 4              # b1, gamma*w2
        + 2 * tm * 4                  # output tile
        + 2 * tm * Dp * 4             # live f32 h tile + one elementwise temp
    )
    vmem_limit = int(min(max(footprint + (2 << 20), 16 << 20), 64 << 20))

    cost = pl.CostEstimate(
        flops=2 * M * Din * Dp + 8 * M * Dp,
        transcendentals=M,            # one rsqrt per row
        bytes_accessed=M * Din * xsize + Din * Dp * wsize + M * xsize + 4 * Dp * 4,
    )

    in_specs = [
        pl.BlockSpec((tm, Din), lambda i: (i, 0)),   # x row tile (original dtype)
        pl.BlockSpec((Din, Dp), lambda i: (0, 0)),   # W1 (grid-invariant)
        pl.BlockSpec((1, Dp), lambda i: (0, 0)),     # b1
        pl.BlockSpec((1, Dp), lambda i: (0, 0)),     # gamma * w2
        pl.BlockSpec((1, 1), lambda i: (0, 0)),      # sum(gamma * w2)
        pl.BlockSpec((1, 1), lambda i: (0, 0)),      # sum(beta * w2) + b2
    ]
    out_specs = pl.BlockSpec((1, tm), lambda i: (i, 0))

    out = pl.pallas_call(
        partial(cls_prediction_kernel, eps=eps, hidden_true=D,
                mxu_dtype=mxu_dtype),
        out_shape=jax.ShapeDtypeStruct((num_tiles, tm), x.dtype),
        grid_spec=pltpu.PrefetchScalarGridSpec(
            num_scalar_prefetch=0,
            grid=grid,
            in_specs=in_specs,
            out_specs=out_specs,
        ),
        compiler_params=pltpu.CompilerParams(
            dimension_semantics=("parallel",),
            vmem_limit_bytes=vmem_limit,
        ),
        cost_estimate=cost,
    )(x2, w1, b1, gw2, sgw2, c)

    out = out.reshape(num_tiles * tm)[:M]
    return out.reshape(*lead, 1)


# ---------------------------------------------------------------------------
# Pure-JAX reference (f32) mirroring the PyTorch module.
# ---------------------------------------------------------------------------
def cls_prediction_ref(x, params, eps: float = 1e-12):
    h = x @ params["w1"] + params["b1"][0]
    h = jnp.maximum(h, 0.0)
    mu = jnp.mean(h, axis=-1, keepdims=True)
    var = jnp.mean((h - mu) ** 2, axis=-1, keepdims=True)
    h = (h - mu) * jax.lax.rsqrt(var + eps) * params["ln_g"][0] + params["ln_b"][0]
    return h @ params["w2"][0][:, None] + params["b2"][0]


# ---------------------------------------------------------------------------
# Deterministic parameter init (shapes from ClsPrediction.__init__).
# ---------------------------------------------------------------------------
def init_params(key, input_size, hidden):
    k1, k2 = jax.random.split(key)
    s = 0.02
    return {
        "w1": s * jax.random.normal(k1, (input_size, hidden), jnp.float32),
        "b1": jnp.zeros((1, hidden), jnp.float32),
        "ln_g": jnp.ones((1, hidden), jnp.float32),
        "ln_b": jnp.zeros((1, hidden), jnp.float32),
        "w2": s * jax.random.normal(k2, (1, hidden), jnp.float32),
        "b2": jnp.zeros((1, 1), jnp.float32),
    }


if __name__ == "__main__":
    # Small config: batch=2, seq=8, input_size=64, hidden=32.
    B, L, DIN, D = 2, 8, 64, 32

    key = jax.random.PRNGKey(0)
    kx, kp = jax.random.split(key)

    x = jax.random.normal(kx, (B, L, DIN), jnp.float32)
    params = init_params(kp, DIN, D)

    out = cls_prediction_pallas(x, params, eps=1e-12)
    jax.block_until_ready(out)

    assert out.shape == (B, L, 1)
    assert bool(jnp.all(jnp.isfinite(out)))

    ref = cls_prediction_ref(x, params, eps=1e-12)
    max_err = float(jnp.max(jnp.abs(out.astype(jnp.float32) - ref)))
    assert max_err < 5e-2, f"max abs error {max_err}"

    print("KERNEL_OK")
</pallas_src>

<mosaic_0001>
module attributes {stable_mosaic.version = 11 : i64} {
  func.func @cls_prediction_kernel(%arg0: i32, %arg1: memref<16x64xf32, #tpu.memory_space<vmem>>, %arg2: memref<64x128xbf16, #tpu.memory_space<vmem>>, %arg3: memref<1x128xf32, #tpu.memory_space<vmem>>, %arg4: memref<1x128xf32, #tpu.memory_space<vmem>>, %arg5: memref<1x1xf32, #tpu.memory_space<vmem>>, %arg6: memref<1x1xf32, #tpu.memory_space<vmem>>, %arg7: memref<1x16xf32, #tpu.memory_space<vmem>>) attributes {dimension_semantics = [#tpu.dimension_semantics<parallel>], iteration_bounds = array<i64: 1>, scalar_prefetch = 0 : i64, scratch_operands = 0 : i64, tpu.core_type = #tpu.core_type<tc>, window_params = [{transform_indices = @transform_0, window_bounds = array<i64: 16, 64>}, {pipeline_mode = #tpu.pipeline_mode<synchronous>, transform_indices = @transform_1, window_bounds = array<i64: 64, 128>}, {pipeline_mode = #tpu.pipeline_mode<synchronous>, transform_indices = @transform_2, window_bounds = array<i64: 1, 128>}, {pipeline_mode = #tpu.pipeline_mode<synchronous>, transform_indices = @transform_3, window_bounds = array<i64: 1, 128>}, {pipeline_mode = #tpu.pipeline_mode<synchronous>, transform_indices = @transform_4, window_bounds = array<i64: 1, 1>}, {pipeline_mode = #tpu.pipeline_mode<synchronous>, transform_indices = @transform_5, window_bounds = array<i64: 1, 1>}, {transform_indices = @transform_6, window_bounds = array<i64: 1, 16>}]} {
    %c0 = arith.constant 0 : index
    %c0_0 = arith.constant 0 : index
    %0 = vector.load %arg1[%c0, %c0_0] : memref<16x64xf32, #tpu.memory_space<vmem>>, vector<16x64xf32>
    %1 = arith.truncf %0 : vector<16x64xf32> to vector<16x64xbf16>
    %c0_1 = arith.constant 0 : index
    %c0_2 = arith.constant 0 : index
    %2 = vector.load %arg2[%c0_1, %c0_2] : memref<64x128xbf16, #tpu.memory_space<vmem>>, vector<64x128xbf16>
    %cst = arith.constant dense<0.000000e+00> : vector<16x128xf32>
    %3 = tpu.matmul %1, %2, %cst {dimension_numbers = #tpu.dot_dimension_numbers<[1], [0], [0], [1], [0, 0, 1, 1], [], []>} : vector<16x64xbf16>, vector<64x128xbf16>, vector<16x128xf32> -> vector<16x128xf32>
    %c0_3 = arith.constant 0 : index
    %c0_4 = arith.constant 0 : index
    %4 = vector.load %arg3[%c0_3, %c0_4] : memref<1x128xf32, #tpu.memory_space<vmem>>, vector<1x128xf32>
    %5 = vector.shape_cast %4 : vector<1x128xf32> to vector<128xf32>
    %6 = vector.shape_cast %5 : vector<128xf32> to vector<1x128xf32>
    %7 = vector.broadcast %6 : vector<1x128xf32> to vector<16x128xf32>
    %8 = arith.addf %3, %7 : vector<16x128xf32>
    %cst_5 = arith.constant 0.000000e+00 : f32
    %9 = vector.broadcast %cst_5 : f32 to vector<16x128xf32>
    %10 = arith.maximumf %8, %9 : vector<16x128xf32>
    %cst_6 = arith.constant dense<0.000000e+00> : vector<16xf32>
    %11 = vector.multi_reduction <add>, %10, %cst_6 [1] : vector<16x128xf32> to vector<16xf32>
    %12 = vector.shape_cast %11 : vector<16xf32> to vector<16x1xf32>
    %13 = arith.mulf %10, %10 : vector<16x128xf32>
    %cst_7 = arith.constant dense<0.000000e+00> : vector<16xf32>
    %14 = vector.multi_reduction <add>, %13, %cst_7 [1] : vector<16x128xf32> to vector<16xf32>
    %15 = vector.shape_cast %14 : vector<16xf32> to vector<16x1xf32>
    %c0_8 = arith.constant 0 : index
    %c0_9 = arith.constant 0 : index
    %16 = vector.load %arg4[%c0_8, %c0_9] : memref<1x128xf32, #tpu.memory_space<vmem>>, vector<1x128xf32>
    %17 = vector.shape_cast %16 : vector<1x128xf32> to vector<128xf32>
    %18 = vector.shape_cast %17 : vector<128xf32> to vector<1x128xf32>
    %19 = vector.broadcast %18 : vector<1x128xf32> to vector<16x128xf32>
    %20 = arith.mulf %10, %19 : vector<16x128xf32>
    %cst_10 = arith.constant dense<0.000000e+00> : vector<16xf32>
    %21 = vector.multi_reduction <add>, %20, %cst_10 [1] : vector<16x128xf32> to vector<16xf32>
    %22 = vector.shape_cast %21 : vector<16xf32> to vector<16x1xf32>
    %cst_11 = arith.constant 3.125000e-02 : f32
    %23 = vector.broadcast %cst_11 : f32 to vector<16x1xf32>
    %24 = arith.mulf %12, %23 : vector<16x1xf32>
    %cst_12 = arith.constant 3.125000e-02 : f32
    %25 = vector.broadcast %cst_12 : f32 to vector<16x1xf32>
    %26 = arith.mulf %15, %25 : vector<16x1xf32>
    %27 = arith.mulf %24, %24 : vector<16x1xf32>
    %28 = arith.subf %26, %27 : vector<16x1xf32>
    %cst_13 = arith.constant 0.000000e+00 : f32
    %29 = vector.broadcast %cst_13 : f32 to vector<16x1xf32>
    %30 = arith.maximumf %28, %29 : vector<16x1xf32>
    %cst_14 = arith.constant 9.99999996E-13 : f32
    %31 = vector.broadcast %cst_14 : f32 to vector<16x1xf32>
    %32 = arith.addf %30, %31 : vector<16x1xf32>
    %33 = math.rsqrt %32 : vector<16x1xf32>
    %c0_15 = arith.constant 0 : index
    %c0_16 = arith.constant 0 : index
    %34 = vector.load %arg5[%c0_15, %c0_16] : memref<1x1xf32, #tpu.memory_space<vmem>>, vector<1x1xf32>
    %35 = vector.broadcast %34 : vector<1x1xf32> to vector<16x1xf32>
    %36 = arith.mulf %24, %35 : vector<16x1xf32>
    %37 = arith.subf %22, %36 : vector<16x1xf32>
    %38 = arith.mulf %33, %37 : vector<16x1xf32>
    %c0_17 = arith.constant 0 : index
    %c0_18 = arith.constant 0 : index
    %39 = vector.load %arg6[%c0_17, %c0_18] : memref<1x1xf32, #tpu.memory_space<vmem>>, vector<1x1xf32>
    %40 = vector.broadcast %39 : vector<1x1xf32> to vector<16x1xf32>
    %41 = arith.addf %38, %40 : vector<16x1xf32>
    %42 = vector.shape_cast %41 : vector<16x1xf32> to vector<16xf32>
    %43 = vector.shape_cast %42 : vector<16xf32> to vector<1x16xf32>
    %c0_19 = arith.constant 0 : index
    %c0_20 = arith.constant 0 : index
    %44 = vector.load %arg7[%c0_19, %c0_20] : memref<1x16xf32, #tpu.memory_space<vmem>>, vector<1x16xf32>
    tpu.vector_store %arg7[%c0_19, %c0_20], %43 {strides = array<i32>} : memref<1x16xf32, #tpu.memory_space<vmem>>, vector<1x16xf32>,
    return
  }
  func.func @transform_0(%arg0: i32) -> (i32, i32) {
    %c0_i32 = arith.constant 0 : i32
    %c0_i32_0 = arith.constant 0 : i32
    return %arg0, %c0_i32 : i32, i32
  }
  func.func @transform_1(%arg0: i32) -> (i32, i32) {
    %c0_i32 = arith.constant 0 : i32
    %c0_i32_0 = arith.constant 0 : i32
    %c0_i32_1 = arith.constant 0 : i32
    return %c0_i32, %c0_i32_0 : i32, i32
  }
  func.func @transform_2(%arg0: i32) -> (i32, i32) {
    %c0_i32 = arith.constant 0 : i32
    %c0_i32_0 = arith.constant 0 : i32
    %c0_i32_1 = arith.constant 0 : i32
    return %c0_i32, %c0_i32_0 : i32, i32
  }
  func.func @transform_3(%arg0: i32) -> (i32, i32) {
    %c0_i32 = arith.constant 0 : i32
    %c0_i32_0 = arith.constant 0 : i32
    %c0_i32_1 = arith.constant 0 : i32
    return %c0_i32, %c0_i32_0 : i32, i32
  }
  func.func @transform_4(%arg0: i32) -> (i32, i32) {
    %c0_i32 = arith.constant 0 : i32
    %c0_i32_0 = arith.constant 0 : i32
    %c0_i32_1 = arith.constant 0 : i32
    return %c0_i32, %c0_i32_0 : i32, i32
  }
  func.func @transform_5(%arg0: i32) -> (i32, i32) {
    %c0_i32 = arith.constant 0 : i32
    %c0_i32_0 = arith.constant 0 : i32
    %c0_i32_1 = arith.constant 0 : i32
    return %c0_i32, %c0_i32_0 : i32, i32
  }
  func.func @transform_6(%arg0: i32) -> (i32, i32) {
    %c0_i32 = arith.constant 0 : i32
    %c0_i32_0 = arith.constant 0 : i32
    return %arg0, %c0_i32 : i32, i32
  }
}

</mosaic_0001>

<llo_original>
// kernel: tpu_custom_call.1
$region0: #{tpu_custom_call.1}
  #allocation0 [shape = 'u32[]', space=smem, size = 0x4, offset = 0x4, fixed_abs, tag = 'smem constant byte address 0x4 - core index']
  #allocation1 [shape = 'u32[144,128]{1,0:T(1,128)}', space=vmem, size = 0x12000, scoped, tag = 'internal scratch']
  #allocation2 [shape = 'f32[1,1]{1,0:T(1,128)S(1)}', space=vmem, size = 0x200, scoped, tag = 'scoped memory for tpu_custom_call.1']
  #allocation3 [shape = 'f32[1,1]{1,0:T(1,128)S(1)}', space=vmem, size = 0x200, scoped, tag = 'scoped memory for tpu_custom_call.1']
  %s0 = inlined_call_operand.hbm [shape: f32[16,64], index: 0, kind: input, shape index: {}]
  %s1 = inlined_call_operand.hbm [shape: bf16[64,128], index: 1, kind: input, shape index: {}]
  %s2 = inlined_call_operand.vmem [shape: f32[1,128], index: 2, kind: input, shape index: {}]
  %s3 = inlined_call_operand.vmem [shape: f32[1,128], index: 3, kind: input, shape index: {}]
  %s4 = inlined_call_operand.<no memory space> [shape: f32[1,1], index: 4, kind: input, shape index: {}]
  %s5 = inlined_call_operand.<no memory space> [shape: f32[1,1], index: 5, kind: input, shape index: {}]
  %s6 = inlined_call_operand.hbm [shape: f32[1,16], index: 6, kind: output, shape index: {}]
  %s7 = sld [smem:[#allocation0]]
  $region42: #{tpu_custom_call.1} parent=0
    _
  %s9 = ssub.s32 1, %s7
  %s10 = scalar_select 0, %s9, %s7
  %v11 = vstv %s4
  %12 = vst [vmem:[#allocation2] sm:$0x1] %v11
  %v13 = vstv %s5
  %14 = vst [vmem:[#allocation3] sm:$0x1] %v13
  $region1: #{tpu_custom_call.1} parent=0
    #allocation4 [shape = 'u8[8192]{0}', space=vmem, size = 0x2000, scoped, tag = 'input window, operand 0, single buffered']
    #allocation5 [shape = 's32[1]{0}', space=sflag, size = 0x4, scoped, tag = 'scoped memory for tpu_custom_call.1']
    #allocation6 [shape = 's32[1]{0}', space=sflag, size = 0x4, scoped, tag = 'scoped memory for tpu_custom_call.1']
    #allocation7 [shape = 'u8[16384]{0}', space=vmem, size = 0x4000, scoped, tag = 'input window, operand 1, single buffered']
    #allocation8 [shape = 's32[1]{0}', space=sflag, size = 0x4, scoped, tag = 'scoped memory for tpu_custom_call.1']
    #allocation9 [shape = 'u8[512]{0}', space=vmem, size = 0x400, scoped, tag = 'output window, operand 0, single buffered']
    %15 = vsyncpa [#allocation5], 0
    %16 = vsyncpa [#allocation8], 0
    %17 = vsyncpa [#allocation6], 0
    // Predicated region
    $region2: #{tpu_custom_call.1} parent=1 // pred_check
      _
    $region3: #{tpu_custom_call.1} parent=1 // pred_check_branch
      %19 = sbr.rel (0) target = $region5
    $region4: #{tpu_custom_call.1} parent=1 // pred_region
      %s21 = ssub.s32 256, 256
      %22 = vsyncadd [#allocation5], %s21
      %s23 = sshll.u32 [#allocation4], 4
      %s24 = int_to_ptr.vmem [resolvable:$true] %s23
      %29 = dma.hbm_to_vmem [thread:$0]  %s0, 256, %s24, [#allocation5], 128, 128, 8
    $region5: #{tpu_custom_call.1} parent=1 // pred_fallthru
      _
    // Predicated region
    $region6: #{tpu_custom_call.1} parent=1 // pred_check
      _
    $region7: #{tpu_custom_call.1} parent=1 // pred_check_branch
      %31 = sbr.rel (0) target = $region9
    $region8: #{tpu_custom_call.1} parent=1 // pred_region
      %s33 = ssub.s32 512, 512
      %34 = vsyncadd [#allocation8], %s33
      %s35 = sshll.u32 [#allocation7], 4
      %s36 = int_to_ptr.vmem [resolvable:$true] %s35
      %41 = dma.hbm_to_vmem [thread:$0]  %s1, 512, %s36, [#allocation8], 64, 64, 4
    $region9: #{tpu_custom_call.1} parent=1 // pred_fallthru
      _
    // Predicated region
    $region10: #{tpu_custom_call.1} parent=1 // pred_check
      _
    $region11: #{tpu_custom_call.1} parent=1 // pred_check_branch
      %43 = sbr.rel (0) target = $region13
    $region12: #{tpu_custom_call.1} parent=1 // pred_region
      _
    $region13: #{tpu_custom_call.1} parent=1 // pred_fallthru
      _
    // Predicated region
    $region14: #{tpu_custom_call.1} parent=1 // pred_check
      _
    $region15: #{tpu_custom_call.1} parent=1 // pred_check_branch
      %45 = sbr.rel (0) target = $region17
    $region16: #{tpu_custom_call.1} parent=1 // pred_region
      _
    $region17: #{tpu_custom_call.1} parent=1 // pred_fallthru
      _
    // Predicated region
    $region18: #{tpu_custom_call.1} parent=1 // pred_check
      _
    $region19: #{tpu_custom_call.1} parent=1 // pred_check_branch
      %47 = sbr.rel (0) target = $region21
    $region20: #{tpu_custom_call.1} parent=1 // pred_region
      _
    $region21: #{tpu_custom_call.1} parent=1 // pred_fallthru
      _
    // Predicated region
    $region22: #{tpu_custom_call.1} parent=1 // pred_check
      _
    $region23: #{tpu_custom_call.1} parent=1 // pred_check_branch
      %49 = sbr.rel (0) target = $region25
    $region24: #{tpu_custom_call.1} parent=1 // pred_region
      _
    $region25: #{tpu_custom_call.1} parent=1 // pred_fallthru
      _
    // Predicated region
    $region26: #{tpu_custom_call.1} parent=1 // pred_check
      _
    $region27: #{tpu_custom_call.1} parent=1 // pred_check_branch
      %51 = sbr.rel (0) target = $region29
    $region28: #{tpu_custom_call.1} parent=1 // pred_region
      %52 = dma.done [#allocation5], 256
    $region29: #{tpu_custom_call.1} parent=1 // pred_fallthru
      _
    // Predicated region
    $region30: #{tpu_custom_call.1} parent=1 // pred_check
      _
    $region31: #{tpu_custom_call.1} parent=1 // pred_check_branch
      %54 = sbr.rel (0) target = $region33
    $region32: #{tpu_custom_call.1} parent=1 // pred_region
      %55 = dma.done [#allocation8], 512
    $region33: #{tpu_custom_call.1} parent=1 // pred_fallthru
      _
    %v57 = vld [vmem:[#allocation4] sm:$0xff]
    %v58 = vld [vmem:[#allocation4 + $0x8] sm:$0xff]
    %v59 = vpack.c.bf16 %v58, %v57
    %v60 = vld [vmem:[#allocation7] sm:$0xf]
    %v61 = vld [vmem:[#allocation7 + $0x4] sm:$0xf]
    %v62 = vld [vmem:[#allocation7 + $0x8] sm:$0xf]
    %v63 = vld [vmem:[#allocation7 + $0xc] sm:$0xf]
    %v64 = vld [vmem:[#allocation7 + $0x10] sm:$0xf]
    %v65 = vld [vmem:[#allocation7 + $0x14] sm:$0xf]
    %v66 = vld [vmem:[#allocation7 + $0x18] sm:$0xf]
    %v67 = vld [vmem:[#allocation7 + $0x1c] sm:$0xf]
    %v68 = vld [vmem:[%s2] sm:$0x1]
    %v70 = vlaneseq
    %v71 = vshrl.u32 %v70, 7
    %v72 = vsub.s32 0, %v71
    %v73 = vrot.slane %v68, %v72
    %v83 = vunpack.c.l.b16 %v60
    %v84 = vunpack.c.l.b16 %v61
    %v85 = vunpack.c.l.b16 %v62
    %v86 = vunpack.c.l.b16 %v63
    %v87 = vunpack.c.l.b16 %v64
    %v88 = vunpack.c.l.b16 %v65
    %v89 = vunpack.c.l.b16 %v66
    %v90 = vunpack.c.l.b16 %v67
    %v91 = vpack.c.b16 %v84, %v83
    %v92 = vpack.c.b16 %v86, %v85
    %v93 = vpack.c.b16 %v88, %v87
    %v94 = vpack.c.b16 %v90, %v89
    %vm99 = vcmask 523264
    %v101 = vsel %vm99, %v59, 0
    %103 = vmatprep.subr.bf16.mxu0 0
    %104 = vmatpush1.bf16.msra.mxu0 %v91
    %105 = vmatprep.subr.bf16.mxu0 0
    %106 = vmatpush1.bf16.msra.mxu0 %v92
    %107 = vmatprep.subr.bf16.mxu0 0
    %108 = vmatpush1.bf16.msra.mxu0 %v93
    %109 = vmatprep.subr.bf16.mxu0 0
    %110 = vmatpush1.bf16.msra.mxu0 %v94
    %111 = vmatprep.subr.bf16.mxu0 0
    %112 = vmatpush1.bf16.msra.mxu0 0
    %113 = vmatprep.subr.bf16.mxu0 0
    %114 = vmatpush1.bf16.msra.mxu0 0
    %115 = vmatprep.subr.bf16.mxu0 0
    %116 = vmatpush1.bf16.msra.mxu0 0
    %117 = vmatprep.subr.bf16.mxu0 0
    %118 = vmatpush1.bf16.msra.mxu0 0
    %119 = vmatprep.subr.bf16.mxu0 0
    %120 = vmatpush1.bf16.msra.mxu0 0
    %121 = vmatprep.subr.bf16.mxu0 0
    %122 = vmatpush1.bf16.msra.mxu0 0
    %123 = vmatprep.subr.bf16.mxu0 0
    %124 = vmatpush1.bf16.msra.mxu0 0
    %125 = vmatprep.subr.bf16.mxu0 0
    %126 = vmatpush1.bf16.msra.mxu0 0
    %127 = vmatprep.subr.bf16.mxu0 0
    %128 = vmatpush1.bf16.msra.mxu0 0
    %129 = vmatprep.subr.bf16.mxu0 0
    %130 = vmatpush1.bf16.msra.mxu0 0
    %131 = vmatprep.subr.bf16.mxu0 0
    %132 = vmatpush1.bf16.msra.mxu0 0
    %133 = vmatprep.subr.bf16.mxu0 0
    %134 = vmatpush1.bf16.msra.mxu0 0
    %135 = vmatprep.mubr.bf16.mxu0 0
    %136 = vmatmul.mubr.bf16.gmra.mrb[0].mxu0 %v101
    %v137 = vpop.f32.mrb[0].mxu0
    %v138 = vadd.f32 %v73, %v137
    %v139 = vpop.f32.mrb[0].mxu0
    %v140 = vpop.f32.mrb[0].mxu0
    %v141 = vadd.f32 %v73, %v140
    %v142 = vpop.f32.mrb[0].mxu0
    %143 = vdwg.mxu0
    %v144 = vmax.f32 %v138, 0.0
    %v145 = vmax.f32 %v141, 0.0
    %146 = vadd.xlane.f32.xlu0 %v144
    %v147 = vpop.xlane.xlu0 %146
    %148 = vadd.xlane.f32.xlu0 %v145
    %v149 = vpop.xlane.xlu0 %148
    %v150 = vmul.f32 %v144, %v144
    %v151 = vmul.f32 %v145, %v145
    %152 = vadd.xlane.f32.xlu0 %v150
    %v153 = vpop.xlane.xlu0 %152
    %154 = vadd.xlane.f32.xlu0 %v151
    %v155 = vpop.xlane.xlu0 %154
    %v156 = vld [vmem:[%s3] sm:$0x1]
    %v158 = vlaneseq
    %v159 = vshrl.u32 %v158, 7
    %v160 = vsub.s32 0, %v159
    %v161 = vrot.slane %v156, %v160
    %v163 = vmul.f32 %v144, %v161
    %v164 = vmul.f32 %v145, %v161
    %165 = vadd.xlane.f32.xlu0 %v163
    %v166 = vpop.xlane.xlu0 %165
    %167 = vadd.xlane.f32.xlu0 %v164
    %v168 = vpop.xlane.xlu0 %167
    %v169 = vmul.f32 %v147, 0.03125
    %v170 = vmul.f32 %v149, 0.03125
    %v171 = vmul.f32 %v153, 0.03125
    %v172 = vmul.f32 %v155, 0.03125
    %v173 = vmul.f32 %v169, %v169
    %v174 = vmul.f32 %v170, %v170
    %v175 = vsub.f32 %v171, %v173
    %v176 = vsub.f32 %v172, %v174
    %v177 = vmax.f32 %v175, 0.0
    %v178 = vmax.f32 %v176, 0.0
    %v179 = vadd.f32 %v177, 1e-12
    %v180 = vadd.f32 %v178, 1e-12
    %v181 = vrsqrt.pop %v179
    %v182 = vrsqrt.pop %v180
    %v183 = vld [vmem:[#allocation2] sm:$0x1]
    %v185 = vlaneseq
    %v186 = vshrl.u32 %v185, 7
    %v187 = vsub.s32 0, %v186
    %v188 = vrot.slane %v183, %v187
    %v190 = vmul.f32 %v169, %v188
    %v191 = vmul.f32 %v170, %v188
    %v192 = vsub.f32 %v166, %v190
    %v193 = vsub.f32 %v168, %v191
    %v194 = vmul.f32 %v181, %v192
    %v195 = vmul.f32 %v182, %v193
    %v196 = vld [vmem:[#allocation3] sm:$0x1]
    %v198 = vlaneseq
    %v199 = vshrl.u32 %v198, 7
    %v200 = vsub.s32 0, %v199
    %v201 = vrot.slane %v196, %v200
    %v203 = vadd.f32 %v194, %v201
    %v204 = vadd.f32 %v195, %v201
    %207 = vset.pattern.permute.xlu0 0
    %208 = vperm.xlu0 %207, %v203
    %v209 = vpop.permute.xlu0 %208
    %210 = vset.pattern.permute.xlu0 0
    %211 = vperm.xlu0 %210, %v204
    %v212 = vpop.permute.xlu0 %211
    %v213 = vlaneseq
    %v214 = vand.u32 %v213, 127
    %v215 = vlaneseq
    %v216 = vshrl.u32 %v215, 7
    %v217 = vsub.s32 %v214, %v216
    %v218 = vrot.slane %v209, %v217
    %v219 = vadd.s32 %v214, 4294967288
    %v220 = vlaneseq
    %v221 = vshrl.u32 %v220, 7
    %v222 = vsub.s32 %v219, %v221
    %v223 = vrot.slane %v212, %v222
    %vm224 = vcmask 130112
    %v225 = vsel %vm224, %v223, %v218
    %vm227 = vcmask 122880
    %228 = vst.msk [vmem:[#allocation9] sm:$0x1] %vm227, %v225
    // Predicated region
    $region34: #{tpu_custom_call.1} parent=1 // pred_check
      _
    $region35: #{tpu_custom_call.1} parent=1 // pred_check_branch
      %230 = sbr.rel (0) target = $region37
    $region36: #{tpu_custom_call.1} parent=1 // pred_region
      %s232 = ssub.s32 16, 16
      %233 = vsyncadd [#allocation6], %s232
      %s235 = sshll.u32 [#allocation9], 4
      %s236 = int_to_ptr.vmem [resolvable:$true] %s235
      %238 = dma.vmem_to_hbm [thread:$0]  %s236, 16, %s6, [#allocation6]
    $region37: #{tpu_custom_call.1} parent=1 // pred_fallthru
      _
    // Predicated region
    $region38: #{tpu_custom_call.1} parent=1 // pred_check
      _
    $region39: #{tpu_custom_call.1} parent=1 // pred_check_branch
      %240 = sbr.rel (0) target = $region41
    $region40: #{tpu_custom_call.1} parent=1 // pred_region
      %241 = dma.done [#allocation6], 16
    $region41: #{tpu_custom_call.1} parent=1 // pred_fallthru
      _
    %242 = vsyncpa [#allocation5], 1
    %243 = vsyncpa [#allocation8], 1
    %244 = vsyncpa [#allocation6], 1

</llo_original>
